<compile_context>
chip_gen: v6e
topology: v6e:2x2x1
jax: 0.10.0
libtpu: 0.0.40
codegen_flags: <defaults>
</compile_context>

<pallas_src>
import numpy as np
import jax
import jax.numpy as jnp
from jax.experimental import pallas as pl
from jax.experimental.pallas import tpu as pltpu

NUM_QUBITS = 6
NUM_LAYERS = 6
DIM = 2 ** NUM_QUBITS  # 64


# ----------------------------------------------------------------------------
# Host-side (NumPy) constant construction — not the hot path.
# ----------------------------------------------------------------------------
def _rot_matrix_np(phi, theta, omega):
    """PennyLane Rot(phi, theta, omega) = RZ(omega) RY(theta) RZ(phi)."""
    c = np.cos(theta / 2.0)
    s = np.sin(theta / 2.0)
    return np.array(
        [[np.exp(-0.5j * (phi + omega)) * c, -np.exp(0.5j * (phi - omega)) * s],
         [np.exp(-0.5j * (phi - omega)) * s, np.exp(0.5j * (phi + omega)) * c]],
        dtype=np.complex128)


def _rx_matrix_np(theta):
    c = np.cos(theta / 2.0)
    s = np.sin(theta / 2.0)
    return np.array([[c, -1j * s], [-1j * s, c]], dtype=np.complex128)


def _full_single_np(gate2x2, wire, n=NUM_QUBITS):
    """Embed a 2x2 gate on `wire` (wire 0 = MSB) into the 2^n x 2^n space."""
    m = np.eye(1, dtype=np.complex128)
    for w in range(n):
        m = np.kron(m, gate2x2 if w == wire else np.eye(2, dtype=np.complex128))
    return m


def _cnot_perm(ctrl, tgt, n=NUM_QUBITS):
    idx = np.arange(2 ** n)
    cbit = (idx >> (n - 1 - ctrl)) & 1
    return np.where(cbit == 1, idx ^ (1 << (n - 1 - tgt)), idx)


def build_entangling_unitary(weights_np):
    """64x64 unitary of StronglyEntanglingLayers(weights) with the default CNOT ring."""
    U = np.eye(DIM, dtype=np.complex128)
    ranges = [(l % (NUM_QUBITS - 1)) + 1 for l in range(NUM_LAYERS)]
    for l in range(NUM_LAYERS):
        for w in range(NUM_QUBITS):
            G = _rot_matrix_np(weights_np[l, w, 0], weights_np[l, w, 1], weights_np[l, w, 2])
            U = _full_single_np(G, w) @ U
        r = ranges[l]
        for w in range(NUM_QUBITS):
            perm = _cnot_perm(w, (w + r) % NUM_QUBITS)
            U = U[perm, :]  # CNOT == (self-inverse) row permutation applied on the left
    return U


def _basis_constants():
    idx = np.arange(DIM)
    # bits[b, i] = bit of basis state b at wire i (wire 0 = MSB)
    bits = np.stack([(idx >> (NUM_QUBITS - 1 - i)) & 1 for i in range(NUM_QUBITS)],
                    axis=1).astype(np.float64)                      # (64, 6)
    popcnt = np.array([bin(b).count("1") for b in idx])
    phase = (-1j) ** popcnt                                         # RX(|0..0>) phases
    signs = 1.0 - 2.0 * bits                                        # (64, 6): +1 / -1 for PauliZ
    return bits, phase, signs


def _build_kernel_constants(weights_np):
    """Fused, transposed (batch-in-lanes) real-matmul operands."""
    bits, phase, signs = _basis_constants()
    U = build_entangling_unitary(weights_np)                        # (64, 64) complex
    # Absorb the product-state phase into the unitary: psi = U_eff @ mag   (mag real).
    U_eff = U * phase[None, :]
    # W_T = [Re(U_eff); Im(U_eff)]  ->  y = W_T @ mag gives stacked Re/Im of psi.
    W_T = np.concatenate([U_eff.real, U_eff.imag], axis=0).astype(np.float32)   # (128, 64)
    # Sign projection (transposed, lane-dense): out(8,TB) = S2T @ (y*y)(128,TB).
    # Entries are exactly +/-1 or 0, so a bf16 cast is lossless.
    S2T = np.zeros((8, 2 * DIM), dtype=np.float32)
    S2T[:NUM_QUBITS, :DIM] = signs.T
    S2T[:NUM_QUBITS, DIM:] = signs.T
    # Per-qubit basis bits, padded to 8 lanes (full-array block).
    bits_t = np.zeros((DIM, 8), dtype=np.float32)
    bits_t[:, :NUM_QUBITS] = bits
    return (jnp.asarray(bits_t),
            jnp.asarray(W_T),
            jnp.asarray(S2T).astype(jnp.bfloat16))


# ----------------------------------------------------------------------------
# Pallas kernel: product-state magnitudes + fused real matmul + |psi|^2 + <Z_i>
# Everything is batch-in-lanes: x (8, TB), mag (64, TB), y (128, TB), out (8, TB).
# ----------------------------------------------------------------------------
def quantum_layer_kernel(scale_ref, xt_ref, bits_ref, wt_ref, s2t_ref, out_ref):
    scale = scale_ref[0, 0]
    half = xt_ref[...] * (scale * 0.5)              # (8, TB): rows 6,7 are zero padding
    c = jnp.cos(half)                               # (8, TB)
    s = jnp.sin(half)                               # (8, TB)

    # mag[b, :] = prod_i ( cos(theta_i/2) if bit_i(b)==0 else sin(theta_i/2) )
    # bits slice (64,1) lane-broadcasts; c/s rows (1,TB) sublane(stride-0)-broadcast.
    mag = jnp.where(bits_ref[:, 0:1] > 0.5, s[0:1, :], c[0:1, :])   # (64, TB)
    for i in range(1, NUM_QUBITS):
        mag = mag * jnp.where(bits_ref[:, i:i + 1] > 0.5, s[i:i + 1, :], c[i:i + 1, :])

    # One fused MXU pass: y = [Re(U_eff); Im(U_eff)] @ mag  -> (128, TB).
    # Kept in f32 (64-term complex accumulation) to hold the 1e-3 reference tolerance.
    y = jnp.dot(wt_ref[...], mag, preferred_element_type=jnp.float32)
    ysq = y * y                                     # Re^2 and Im^2 halves

    # <Z_i> = sum_j S2T[i, j] * ysq[j, :]  — tiny (8,128)x(128,TB) matmul, bf16 operands
    # (S2T is exactly +/-1/0), f32 accumulation; lane-dense (8, TB) output store.
    out_ref[...] = jnp.dot(s2t_ref[...], ysq.astype(jnp.bfloat16),
                           preferred_element_type=jnp.float32)


def _round_up(n, m):
    return ((n + m - 1) // m) * m


def enhanced_quantum_layer(x, scale, weights, *, block_b=2048):
    """x: (B, 6) float32 -> (B, 6) float32 of PauliZ expectation values."""
    B = x.shape[0]
    # Grid of at least 2 (even) steps so v7x can split the batch over both TensorCores;
    # lane tile TB is a multiple of 128 and sized to keep padding small.
    n_steps = max(2, -(-B // block_b))
    if n_steps % 2:
        n_steps += 1
    TB = _round_up(-(-B // n_steps), 128)
    Bp = TB * n_steps

    # Transposed, zero-padded input slab: (8, Bp); rows 6,7 and cols >= B are zeros.
    x_t = jnp.zeros((8, Bp), dtype=jnp.float32)
    x_t = x_t.at[:NUM_QUBITS, :B].set(x.astype(jnp.float32).T)

    # Host-side constant folding of the fixed circuit unitary (weights treated as static).
    bits_t, W_T, S2T = _build_kernel_constants(np.asarray(weights, dtype=np.float64))
    scale_arr = jnp.asarray(scale, dtype=jnp.float32).reshape(1, 1)

    flops = Bp * (2 * (2 * DIM) * DIM          # fused unitary matmul (128x64xTB)
                  + 2 * 8 * (2 * DIM)          # sign projection matmul (8x128xTB)
                  + 12 * DIM + 2 * (2 * DIM))  # elementwise mag / square work
    bytes_accessed = (4 * 8 * Bp               # x slab
                      + 4 * 8 * Bp             # output slab
                      + 4 * (DIM * 8 + 2 * DIM * DIM)
                      + 2 * 8 * 2 * DIM)

    out_t = pl.pallas_call(
        quantum_layer_kernel,
        out_shape=jax.ShapeDtypeStruct((8, Bp), jnp.float32),
        grid=(n_steps,),
        in_specs=[
            # scalar "scale" parameter, resident in SMEM
            pl.BlockSpec((1, 1), lambda i: (0, 0),
                         memory_space=pltpu.MemorySpace.SMEM),
            # batch-in-lanes input tile
            pl.BlockSpec((8, TB), lambda i: (0, i)),
            # resident constants (same block every grid step)
            pl.BlockSpec((DIM, 8), lambda i: (0, 0)),
            pl.BlockSpec((2 * DIM, DIM), lambda i: (0, 0)),
            pl.BlockSpec((8, 2 * DIM), lambda i: (0, 0)),
        ],
        out_specs=pl.BlockSpec((8, TB), lambda i: (0, i)),
        compiler_params=pltpu.CompilerParams(
            dimension_semantics=("parallel",),
            vmem_limit_bytes=16 * 1024 * 1024,   # actual footprint is a few MiB
        ),
        cost_estimate=pl.CostEstimate(
            flops=flops,
            transcendentals=2 * 8 * Bp,
            bytes_accessed=bytes_accessed,
        ),
    )(scale_arr, x_t, bits_t, W_T, S2T)

    return out_t[:NUM_QUBITS, :B].T


# ----------------------------------------------------------------------------
# Exact NumPy reference (gate-by-gate statevector simulation) for validation.
# ----------------------------------------------------------------------------
def reference_forward(x_np, scale, weights_np):
    U = build_entangling_unitary(weights_np)
    _, _, signs = _basis_constants()
    outs = []
    for b in range(x_np.shape[0]):
        theta = np.asarray(x_np[b], dtype=np.float64) * scale
        psi = np.zeros(DIM, dtype=np.complex128)
        psi[0] = 1.0
        for w in range(NUM_QUBITS):
            psi = _full_single_np(_rx_matrix_np(theta[w]), w) @ psi
        psi = U @ psi
        probs = np.abs(psi) ** 2
        outs.append(probs @ signs)
    return np.stack(outs, axis=0).astype(np.float32)


if __name__ == "__main__":
    key = jax.random.PRNGKey(0)
    k_x, k_w = jax.random.split(key)

    batch = 2
    x = jax.random.normal(k_x, (batch, NUM_QUBITS), dtype=jnp.float32)

    # Deterministic parameter init (TorchLayer default: uniform in [0, 2*pi); scale = 0.1)
    weights = jax.random.uniform(k_w, (NUM_LAYERS, NUM_QUBITS, 3),
                                 minval=0.0, maxval=2.0 * np.pi, dtype=jnp.float32)
    scale = jnp.asarray(0.1, dtype=jnp.float32)

    out = enhanced_quantum_layer(x, scale, weights)
    out = jax.block_until_ready(out)

    ref = reference_forward(np.asarray(x), float(scale), np.asarray(weights, dtype=np.float64))
    np.testing.assert_allclose(np.asarray(out), ref, atol=1e-3, rtol=1e-3)

    print("KERNEL_OK")
</pallas_src>

<mosaic_0001>
module attributes {stable_mosaic.version = 11 : i64} {
  func.func @quantum_layer_kernel(%arg0: i32, %arg1: memref<1x1xf32, #tpu.memory_space<smem>>, %arg2: memref<8x128xf32, #tpu.memory_space<vmem>>, %arg3: memref<64x8xf32, #tpu.memory_space<vmem>>, %arg4: memref<128x64xf32, #tpu.memory_space<vmem>>, %arg5: memref<8x128xbf16, #tpu.memory_space<vmem>>, %arg6: memref<8x128xf32, #tpu.memory_space<vmem>>) attributes {dimension_semantics = [#tpu.dimension_semantics<parallel>], iteration_bounds = array<i64: 2>, scalar_prefetch = 0 : i64, scratch_operands = 0 : i64, tpu.core_type = #tpu.core_type<tc>, window_params = [{transform_indices = @transform_0, window_bounds = array<i64: 1, 1>}, {transform_indices = @transform_1, window_bounds = array<i64: 8, 128>}, {pipeline_mode = #tpu.pipeline_mode<synchronous>, transform_indices = @transform_2, window_bounds = array<i64: 64, 8>}, {pipeline_mode = #tpu.pipeline_mode<synchronous>, transform_indices = @transform_3, window_bounds = array<i64: 128, 64>}, {pipeline_mode = #tpu.pipeline_mode<synchronous>, transform_indices = @transform_4, window_bounds = array<i64: 8, 128>}, {transform_indices = @transform_5, window_bounds = array<i64: 8, 128>}]} {
    %c0 = arith.constant 0 : index
    %c0_0 = arith.constant 0 : index
    %0 = memref.load %arg1[%c0, %c0_0] : memref<1x1xf32, #tpu.memory_space<smem>>
    %c0_1 = arith.constant 0 : index
    %c0_2 = arith.constant 0 : index
    %1 = vector.load %arg2[%c0_1, %c0_2] : memref<8x128xf32, #tpu.memory_space<vmem>>, vector<8x128xf32>
    %cst = arith.constant 5.000000e-01 : f32
    %2 = arith.mulf %0, %cst : f32
    %3 = vector.broadcast %2 : f32 to vector<8x128xf32>
    %4 = arith.mulf %1, %3 : vector<8x128xf32>
    %5 = math.cos %4 : vector<8x128xf32>
    %6 = math.sin %4 : vector<8x128xf32>
    %c0_3 = arith.constant 0 : index
    %c0_4 = arith.constant 0 : index
    %7 = vector.load %arg3[%c0_3, %c0_4] : memref<64x8xf32, #tpu.memory_space<vmem>>, vector<64x1xf32>
    %cst_5 = arith.constant 5.000000e-01 : f32
    %8 = vector.broadcast %cst_5 : f32 to vector<64x1xf32>
    %9 = arith.cmpf ogt, %7, %8 : vector<64x1xf32>
    %10 = vector.extract_strided_slice %6 {offsets = [0, 0], sizes = [1, 128], strides = [1, 1]} : vector<8x128xf32> to vector<1x128xf32>
    %11 = vector.extract_strided_slice %5 {offsets = [0, 0], sizes = [1, 128], strides = [1, 1]} : vector<8x128xf32> to vector<1x128xf32>
    %12 = vector.shape_cast %9 : vector<64x1xi1> to vector<64x1xi1>
    %13 = vector.broadcast %12 : vector<64x1xi1> to vector<64x128xi1>
    %14 = vector.shape_cast %10 : vector<1x128xf32> to vector<1x128xf32>
    %15 = vector.broadcast %14 : vector<1x128xf32> to vector<64x128xf32>
    %16 = vector.shape_cast %11 : vector<1x128xf32> to vector<1x128xf32>
    %17 = vector.broadcast %16 : vector<1x128xf32> to vector<64x128xf32>
    %18 = arith.select %13, %15, %17 : vector<64x128xi1>, vector<64x128xf32>
    %c0_6 = arith.constant 0 : index
    %c1 = arith.constant 1 : index
    %19 = vector.load %arg3[%c0_6, %c1] : memref<64x8xf32, #tpu.memory_space<vmem>>, vector<64x1xf32>
    %cst_7 = arith.constant 5.000000e-01 : f32
    %20 = vector.broadcast %cst_7 : f32 to vector<64x1xf32>
    %21 = arith.cmpf ogt, %19, %20 : vector<64x1xf32>
    %22 = vector.extract_strided_slice %6 {offsets = [1, 0], sizes = [1, 128], strides = [1, 1]} : vector<8x128xf32> to vector<1x128xf32>
    %23 = vector.extract_strided_slice %5 {offsets = [1, 0], sizes = [1, 128], strides = [1, 1]} : vector<8x128xf32> to vector<1x128xf32>
    %24 = vector.shape_cast %21 : vector<64x1xi1> to vector<64x1xi1>
    %25 = vector.broadcast %24 : vector<64x1xi1> to vector<64x128xi1>
    %26 = vector.shape_cast %22 : vector<1x128xf32> to vector<1x128xf32>
    %27 = vector.broadcast %26 : vector<1x128xf32> to vector<64x128xf32>
    %28 = vector.shape_cast %23 : vector<1x128xf32> to vector<1x128xf32>
    %29 = vector.broadcast %28 : vector<1x128xf32> to vector<64x128xf32>
    %30 = arith.select %25, %27, %29 : vector<64x128xi1>, vector<64x128xf32>
    %31 = arith.mulf %18, %30 : vector<64x128xf32>
    %c0_8 = arith.constant 0 : index
    %c2 = arith.constant 2 : index
    %32 = vector.load %arg3[%c0_8, %c2] : memref<64x8xf32, #tpu.memory_space<vmem>>, vector<64x1xf32>
    %cst_9 = arith.constant 5.000000e-01 : f32
    %33 = vector.broadcast %cst_9 : f32 to vector<64x1xf32>
    %34 = arith.cmpf ogt, %32, %33 : vector<64x1xf32>
    %35 = vector.extract_strided_slice %6 {offsets = [2, 0], sizes = [1, 128], strides = [1, 1]} : vector<8x128xf32> to vector<1x128xf32>
    %36 = vector.extract_strided_slice %5 {offsets = [2, 0], sizes = [1, 128], strides = [1, 1]} : vector<8x128xf32> to vector<1x128xf32>
    %37 = vector.shape_cast %34 : vector<64x1xi1> to vector<64x1xi1>
    %38 = vector.broadcast %37 : vector<64x1xi1> to vector<64x128xi1>
    %39 = vector.shape_cast %35 : vector<1x128xf32> to vector<1x128xf32>
    %40 = vector.broadcast %39 : vector<1x128xf32> to vector<64x128xf32>
    %41 = vector.shape_cast %36 : vector<1x128xf32> to vector<1x128xf32>
    %42 = vector.broadcast %41 : vector<1x128xf32> to vector<64x128xf32>
    %43 = arith.select %38, %40, %42 : vector<64x128xi1>, vector<64x128xf32>
    %44 = arith.mulf %31, %43 : vector<64x128xf32>
    %c0_10 = arith.constant 0 : index
    %c3 = arith.constant 3 : index
    %45 = vector.load %arg3[%c0_10, %c3] : memref<64x8xf32, #tpu.memory_space<vmem>>, vector<64x1xf32>
    %cst_11 = arith.constant 5.000000e-01 : f32
    %46 = vector.broadcast %cst_11 : f32 to vector<64x1xf32>
    %47 = arith.cmpf ogt, %45, %46 : vector<64x1xf32>
    %48 = vector.extract_strided_slice %6 {offsets = [3, 0], sizes = [1, 128], strides = [1, 1]} : vector<8x128xf32> to vector<1x128xf32>
    %49 = vector.extract_strided_slice %5 {offsets = [3, 0], sizes = [1, 128], strides = [1, 1]} : vector<8x128xf32> to vector<1x128xf32>
    %50 = vector.shape_cast %47 : vector<64x1xi1> to vector<64x1xi1>
    %51 = vector.broadcast %50 : vector<64x1xi1> to vector<64x128xi1>
    %52 = vector.shape_cast %48 : vector<1x128xf32> to vector<1x128xf32>
    %53 = vector.broadcast %52 : vector<1x128xf32> to vector<64x128xf32>
    %54 = vector.shape_cast %49 : vector<1x128xf32> to vector<1x128xf32>
    %55 = vector.broadcast %54 : vector<1x128xf32> to vector<64x128xf32>
    %56 = arith.select %51, %53, %55 : vector<64x128xi1>, vector<64x128xf32>
    %57 = arith.mulf %44, %56 : vector<64x128xf32>
    %c0_12 = arith.constant 0 : index
    %c4 = arith.constant 4 : index
    %58 = vector.load %arg3[%c0_12, %c4] : memref<64x8xf32, #tpu.memory_space<vmem>>, vector<64x1xf32>
    %cst_13 = arith.constant 5.000000e-01 : f32
    %59 = vector.broadcast %cst_13 : f32 to vector<64x1xf32>
    %60 = arith.cmpf ogt, %58, %59 : vector<64x1xf32>
    %61 = vector.extract_strided_slice %6 {offsets = [4, 0], sizes = [1, 128], strides = [1, 1]} : vector<8x128xf32> to vector<1x128xf32>
    %62 = vector.extract_strided_slice %5 {offsets = [4, 0], sizes = [1, 128], strides = [1, 1]} : vector<8x128xf32> to vector<1x128xf32>
    %63 = vector.shape_cast %60 : vector<64x1xi1> to vector<64x1xi1>
    %64 = vector.broadcast %63 : vector<64x1xi1> to vector<64x128xi1>
    %65 = vector.shape_cast %61 : vector<1x128xf32> to vector<1x128xf32>
    %66 = vector.broadcast %65 : vector<1x128xf32> to vector<64x128xf32>
    %67 = vector.shape_cast %62 : vector<1x128xf32> to vector<1x128xf32>
    %68 = vector.broadcast %67 : vector<1x128xf32> to vector<64x128xf32>
    %69 = arith.select %64, %66, %68 : vector<64x128xi1>, vector<64x128xf32>
    %70 = arith.mulf %57, %69 : vector<64x128xf32>
    %c0_14 = arith.constant 0 : index
    %c5 = arith.constant 5 : index
    %71 = vector.load %arg3[%c0_14, %c5] : memref<64x8xf32, #tpu.memory_space<vmem>>, vector<64x1xf32>
    %cst_15 = arith.constant 5.000000e-01 : f32
    %72 = vector.broadcast %cst_15 : f32 to vector<64x1xf32>
    %73 = arith.cmpf ogt, %71, %72 : vector<64x1xf32>
    %74 = vector.extract_strided_slice %6 {offsets = [5, 0], sizes = [1, 128], strides = [1, 1]} : vector<8x128xf32> to vector<1x128xf32>
    %75 = vector.extract_strided_slice %5 {offsets = [5, 0], sizes = [1, 128], strides = [1, 1]} : vector<8x128xf32> to vector<1x128xf32>
    %76 = vector.shape_cast %73 : vector<64x1xi1> to vector<64x1xi1>
    %77 = vector.broadcast %76 : vector<64x1xi1> to vector<64x128xi1>
    %78 = vector.shape_cast %74 : vector<1x128xf32> to vector<1x128xf32>
    %79 = vector.broadcast %78 : vector<1x128xf32> to vector<64x128xf32>
    %80 = vector.shape_cast %75 : vector<1x128xf32> to vector<1x128xf32>
    %81 = vector.broadcast %80 : vector<1x128xf32> to vector<64x128xf32>
    %82 = arith.select %77, %79, %81 : vector<64x128xi1>, vector<64x128xf32>
    %83 = arith.mulf %70, %82 : vector<64x128xf32>
    %c0_16 = arith.constant 0 : index
    %c0_17 = arith.constant 0 : index
    %84 = vector.load %arg4[%c0_16, %c0_17] : memref<128x64xf32, #tpu.memory_space<vmem>>, vector<128x64xf32>
    %cst_18 = arith.constant dense<0.000000e+00> : vector<128x128xf32>
    %85 = tpu.matmul %84, %83, %cst_18 {dimension_numbers = #tpu.dot_dimension_numbers<[1], [0], [0], [1], [0, 0, 1, 1], [], []>} : vector<128x64xf32>, vector<64x128xf32>, vector<128x128xf32> -> vector<128x128xf32>
    %86 = arith.mulf %85, %85 : vector<128x128xf32>
    %c0_19 = arith.constant 0 : index
    %c0_20 = arith.constant 0 : index
    %87 = vector.load %arg5[%c0_19, %c0_20] : memref<8x128xbf16, #tpu.memory_space<vmem>>, vector<8x128xbf16>
    %88 = arith.truncf %86 : vector<128x128xf32> to vector<128x128xbf16>
    %cst_21 = arith.constant dense<0.000000e+00> : vector<8x128xf32>
    %89 = tpu.matmul %87, %88, %cst_21 {dimension_numbers = #tpu.dot_dimension_numbers<[1], [0], [0], [1], [0, 0, 1, 1], [], []>} : vector<8x128xbf16>, vector<128x128xbf16>, vector<8x128xf32> -> vector<8x128xf32>
    %c0_22 = arith.constant 0 : index
    %c0_23 = arith.constant 0 : index
    %90 = vector.load %arg6[%c0_22, %c0_23] : memref<8x128xf32, #tpu.memory_space<vmem>>, vector<8x128xf32>
    tpu.vector_store %arg6[%c0_22, %c0_23], %89 {strides = array<i32>} : memref<8x128xf32, #tpu.memory_space<vmem>>, vector<8x128xf32>,
    return
  }
  func.func @transform_0(%arg0: i32) -> (i32, i32) {
    %c0_i32 = arith.constant 0 : i32
    %c0_i32_0 = arith.constant 0 : i32
    %c0_i32_1 = arith.constant 0 : i32
    return %c0_i32, %c0_i32_0 : i32, i32
  }
  func.func @transform_1(%arg0: i32) -> (i32, i32) {
    %c0_i32 = arith.constant 0 : i32
    %c0_i32_0 = arith.constant 0 : i32
    return %c0_i32, %arg0 : i32, i32
  }
  func.func @transform_2(%arg0: i32) -> (i32, i32) {
    %c0_i32 = arith.constant 0 : i32
    %c0_i32_0 = arith.constant 0 : i32
    %c0_i32_1 = arith.constant 0 : i32
    return %c0_i32, %c0_i32_0 : i32, i32
  }
  func.func @transform_3(%arg0: i32) -> (i32, i32) {
    %c0_i32 = arith.constant 0 : i32
    %c0_i32_0 = arith.constant 0 : i32
    %c0_i32_1 = arith.constant 0 : i32
    return %c0_i32, %c0_i32_0 : i32, i32
  }
  func.func @transform_4(%arg0: i32) -> (i32, i32) {
    %c0_i32 = arith.constant 0 : i32
    %c0_i32_0 = arith.constant 0 : i32
    %c0_i32_1 = arith.constant 0 : i32
    return %c0_i32, %c0_i32_0 : i32, i32
  }
  func.func @transform_5(%arg0: i32) -> (i32, i32) {
    %c0_i32 = arith.constant 0 : i32
    %c0_i32_0 = arith.constant 0 : i32
    return %c0_i32, %arg0 : i32, i32
  }
}

</mosaic_0001>

<llo_original>
// kernel: tpu_custom_call.1
$region0: #{tpu_custom_call.1}
  #allocation0 [shape = 'u32[]', space=smem, size = 0x4, offset = 0x4, fixed_abs, tag = 'smem constant byte address 0x4 - core index']
  #allocation1 [shape = 'u32[144,128]{1,0:T(1,128)}', space=vmem, size = 0x12000, scoped, tag = 'internal scratch']
  #allocation2 [shape = 'f32[1,1]{1,0:T(1,128)S(6)}', space=smem, size = 0x200, scoped, tag = 'scoped memory for tpu_custom_call.1']
  %s0 = inlined_call_operand.<no memory space> [shape: f32[1,1], index: 0, kind: input, shape index: {}]
  %s1 = inlined_call_operand.vmem [shape: f32[8,256], index: 1, kind: input, shape index: {}]
  %s2 = inlined_call_operand.vmem [shape: f32[64,8], index: 2, kind: input, shape index: {}]
  %s3 = inlined_call_operand.vmem [shape: f32[128,64], index: 3, kind: input, shape index: {}]
  %s4 = inlined_call_operand.vmem [shape: bf16[8,128], index: 4, kind: input, shape index: {}]
  %s5 = inlined_call_operand.hbm [shape: f32[8,256], index: 5, kind: output, shape index: {}]
  %s6 = sld [smem:[#allocation0]]
  $region53: #{tpu_custom_call.1} parent=0
    _
  %s8 = ssub.s32 1, %s6
  %s9 = scalar_select 0, %s8, %s6
  %10 = sst [smem:[#allocation2]] %s0
  $region1: #{tpu_custom_call.1} parent=0
    #allocation3 [shape = 'u8[8192]{0}', space=vmem, size = 0x2000, scoped, tag = 'output window, operand 0']
    #allocation4 [shape = 's32[2]{0}', space=sflag, size = 0x8, scoped, tag = 'scoped memory for tpu_custom_call.1']
    %11 = vsyncpa [#allocation4], 0
    %s12 = scalar_lea.sflag [#allocation4], 1
    %13 = vsyncpa %s12, 0
    loop: start=0, step=1, limit=4
    $region2: #{tpu_custom_call.1} parent=1 // loop_pre_header
      _
    $region3: #{tpu_custom_call.1} parent=1 // loop_header
      %s15 = sphi 0, %s19
      %p16 = scmp.ge.s32.totalorder %s15, 4
      %s23 = sphi 0, %s23
      %s25 = sphi 0, %s23
      %s26 = sphi 0, %s25
      %s40 = sphi 0, %s26
      %s46 = sphi 0, %s48
      %s49 = sphi 0, %s46
      %s50 = sphi 0, %s49
      %s66 = sphi 0, %s50
      %s70 = sphi 0, %s70
      %s72 = sphi 0, %s70
      %s73 = sphi 0, %s72
      %s87 = sphi 0, %s73
      %s91 = sphi 0, %s91
      %s93 = sphi 0, %s91
      %s94 = sphi 0, %s93
      %s108 = sphi 0, %s94
      %s112 = sphi 0, %s112
      %s114 = sphi 0, %s112
      %s115 = sphi 0, %s114
      %s129 = sphi 0, %s115
      %s135 = sphi 0, %s137
      %s138 = sphi 0, %s135
      %s139 = sphi 0, %s138
      %s155 = sphi 0, %s139
    $region4: #{tpu_custom_call.1} parent=1 // loop_header_branch
      %18 = sbr.rel (%p16) target = $region8
    $region5: #{tpu_custom_call.1} parent=1 // loop_body
      %s20 = ssub.s32 %s15, 1
      %s21 = ssub.s32 %s15, 2
      %s22 = sadd.s32 %s15, 1
      %s24 = sadd.s32 %s23, 1
      %p27 = scmp.eq.s32.totalorder %s15, 1
      %p28 = scmp.ne.s32.totalorder %s23, %s25
      %p29 = scmp.eq.s32.totalorder %s15, 0
      %p30 = por %p28, %p29
      %p31 = scmp.ne.s32.totalorder %s23, %s25
      %p32 = scmp.eq.s32.totalorder %s20, 1
      %p33 = por %p31, %p32
      %p34 = scmp.ne.s32.totalorder %s25, %s26
      %p35 = scmp.eq.s32.totalorder %s20, 0
      %p36 = por %p34, %p35
      %p37 = scmp.ne.s32.totalorder %s25, %s26
      %p38 = scmp.eq.s32.totalorder %s21, 1
      %p39 = por %p37, %p38
      %p41 = scmp.ne.s32.totalorder %s26, %s40
      %p42 = scmp.eq.s32.totalorder %s21, 0
      %p43 = por %p41, %p42
      %s44 = ssub.s32 %s15, %s22
      %p45 = scmp.eq.s32.totalorder %s44, 0
      %s47 = sadd.s32 %s46, 1
      %s48 = scalar_select %p45, %s46, %s47
      %p51 = pneg %p45
      %p52 = scmp.eq.s32.totalorder %s15, 1
      %p53 = por %p51, %p52
      %p54 = scmp.ne.s32.totalorder %s46, %s49
      %p55 = scmp.eq.s32.totalorder %s15, 0
      %p56 = por %p54, %p55
      %p57 = scmp.ne.s32.totalorder %s46, %s49
      %p58 = scmp.eq.s32.totalorder %s20, 1
      %p59 = por %p57, %p58
      %p60 = scmp.ne.s32.totalorder %s49, %s50
      %p61 = scmp.eq.s32.totalorder %s20, 0
      %p62 = por %p60, %p61
      %p63 = scmp.ne.s32.totalorder %s49, %s50
      %p64 = scmp.eq.s32.totalorder %s21, 1
      %p65 = por %p63, %p64
      %p67 = scmp.ne.s32.totalorder %s50, %s66
      %p68 = scmp.eq.s32.totalorder %s21, 0
      %p69 = por %p67, %p68
      %s71 = sadd.s32 %s70, 1
      %p74 = scmp.eq.s32.totalorder %s15, 1
      %p75 = scmp.ne.s32.totalorder %s70, %s72
      %p76 = scmp.eq.s32.totalorder %s15, 0
      %p77 = por %p75, %p76
      %p78 = scmp.ne.s32.totalorder %s70, %s72
      %p79 = scmp.eq.s32.totalorder %s20, 1
      %p80 = por %p78, %p79
      %p81 = scmp.ne.s32.totalorder %s72, %s73
      %p82 = scmp.eq.s32.totalorder %s20, 0
      %p83 = por %p81, %p82
      %p84 = scmp.ne.s32.totalorder %s72, %s73
      %p85 = scmp.eq.s32.totalorder %s21, 1
      %p86 = por %p84, %p85
      %p88 = scmp.ne.s32.totalorder %s73, %s87
      %p89 = scmp.eq.s32.totalorder %s21, 0
      %p90 = por %p88, %p89
      %s92 = sadd.s32 %s91, 1
      %p95 = scmp.eq.s32.totalorder %s15, 1
      %p96 = scmp.ne.s32.totalorder %s91, %s93
      %p97 = scmp.eq.s32.totalorder %s15, 0
      %p98 = por %p96, %p97
      %p99 = scmp.ne.s32.totalorder %s91, %s93
      %p100 = scmp.eq.s32.totalorder %s20, 1
      %p101 = por %p99, %p100
      %p102 = scmp.ne.s32.totalorder %s93, %s94
      %p103 = scmp.eq.s32.totalorder %s20, 0
      %p104 = por %p102, %p103
      %p105 = scmp.ne.s32.totalorder %s93, %s94
      %p106 = scmp.eq.s32.totalorder %s21, 1
      %p107 = por %p105, %p106
      %p109 = scmp.ne.s32.totalorder %s94, %s108
      %p110 = scmp.eq.s32.totalorder %s21, 0
      %p111 = por %p109, %p110
      %s113 = sadd.s32 %s112, 1
      %p116 = scmp.eq.s32.totalorder %s15, 1
      %p117 = scmp.ne.s32.totalorder %s112, %s114
      %p118 = scmp.eq.s32.totalorder %s15, 0
      %p119 = por %p117, %p118
      %p120 = scmp.ne.s32.totalorder %s112, %s114
      %p121 = scmp.eq.s32.totalorder %s20, 1
      %p122 = por %p120, %p121
      %p123 = scmp.ne.s32.totalorder %s114, %s115
      %p124 = scmp.eq.s32.totalorder %s20, 0
      %p125 = por %p123, %p124
      %p126 = scmp.ne.s32.totalorder %s114, %s115
      %p127 = scmp.eq.s32.totalorder %s21, 1
      %p128 = por %p126, %p127
      %p130 = scmp.ne.s32.totalorder %s115, %s129
      %p131 = scmp.eq.s32.totalorder %s21, 0
      %p132 = por %p130, %p131
      %s133 = ssub.s32 %s15, %s22
      %p134 = scmp.eq.s32.totalorder %s133, 0
      %s136 = sadd.s32 %s135, 1
      %s137 = scalar_select %p134, %s135, %s136
      %p140 = pneg %p134
      %p141 = scmp.eq.s32.totalorder %s15, 1
      %p142 = por %p140, %p141
      %p143 = scmp.ne.s32.totalorder %s135, %s138
      %p144 = scmp.eq.s32.totalorder %s15, 0
      %p145 = por %p143, %p144
      %p146 = scmp.ne.s32.totalorder %s135, %s138
      %p147 = scmp.eq.s32.totalorder %s20, 1
      %p148 = por %p146, %p147
      %p149 = scmp.ne.s32.totalorder %s138, %s139
      %p150 = scmp.eq.s32.totalorder %s20, 0
      %p151 = por %p149, %p150
      %p152 = scmp.ne.s32.totalorder %s138, %s139
      %p153 = scmp.eq.s32.totalorder %s21, 1
      %p154 = por %p152, %p153
      %p156 = scmp.ne.s32.totalorder %s139, %s155
      %p157 = scmp.eq.s32.totalorder %s21, 0
      %p158 = por %p156, %p157
      %p159 = scmp.le.s32.totalorder 1, %s15
      %p160 = scmp.lt.s32.totalorder %s15, 3
      %p161 = pnand %p159, %p160
      %p162 = pneg %p161
      // Predicated region
      $region9: #{tpu_custom_call.1} parent=5 // pred_check
        _
      $region10: #{tpu_custom_call.1} parent=5 // pred_check_branch
        %164 = sbr.rel (%p161) target = $region12
      $region11: #{tpu_custom_call.1} parent=5 // pred_region
        %s165 = ssub.s32 %s15, 1
        // Predicated region
        $region13: #{tpu_custom_call.1} parent=11 // pred_check
          %p166 = pneg %p36
        $region14: #{tpu_custom_call.1} parent=11 // pred_check_branch
          %168 = sbr.rel (%p166) target = $region16
        $region15: #{tpu_custom_call.1} parent=11 // pred_region
          _
        $region16: #{tpu_custom_call.1} parent=11 // pred_fallthru
          _
        // Predicated region
        $region17: #{tpu_custom_call.1} parent=11 // pred_check
          %p169 = pneg %p83
        $region18: #{tpu_custom_call.1} parent=11 // pred_check_branch
          %171 = sbr.rel (%p169) target = $region20
        $region19: #{tpu_custom_call.1} parent=11 // pred_region
          _
        $region20: #{tpu_custom_call.1} parent=11 // pred_fallthru
          _
        // Predicated region
        $region21: #{tpu_custom_call.1} parent=11 // pred_check
          %p172 = pneg %p104
        $region22: #{tpu_custom_call.1} parent=11 // pred_check_branch
          %174 = sbr.rel (%p172) target = $region24
        $region23: #{tpu_custom_call.1} parent=11 // pred_region
          _
        $region24: #{tpu_custom_call.1} parent=11 // pred_fallthru
          _
        // Predicated region
        $region25: #{tpu_custom_call.1} parent=11 // pred_check
          %p175 = pneg %p125
        $region26: #{tpu_custom_call.1} parent=11 // pred_check_branch
          %177 = sbr.rel (%p175) target = $region28
        $region27: #{tpu_custom_call.1} parent=11 // pred_region
          _
        $region28: #{tpu_custom_call.1} parent=11 // pred_fallthru
          _
      $region12: #{tpu_custom_call.1} parent=5 // pred_fallthru
        _
      %p178 = scmp.lt.s32.totalorder %s15, 2
      // Predicated region
      $region29: #{tpu_custom_call.1} parent=5 // pred_check
        %p179 = pneg %p178
      $region30: #{tpu_custom_call.1} parent=5 // pred_check_branch
        %181 = sbr.rel (%p179) target = $region32
      $region31: #{tpu_custom_call.1} parent=5 // pred_region
        // Predicated region
        $region33: #{tpu_custom_call.1} parent=31 // pred_check
          %p182 = pneg %p56
        $region34: #{tpu_custom_call.1} parent=31 // pred_check_branch
          %184 = sbr.rel (%p182) target = $region36
        $region35: #{tpu_custom_call.1} parent=31 // pred_region
          %p185 = scmp.lt.s32.totalorder %s15, 1
          %s186 = scalar_select %p185, %s15, 1
          %s187 = smul.addr %s186, 8
          %s188 = scalar_lea.vmem %s1, %s187
        $region36: #{tpu_custom_call.1} parent=31 // pred_fallthru
          _
      $region32: #{tpu_custom_call.1} parent=5 // pred_fallthru
        _
      %p189 = scmp.le.s32.totalorder 1, %s15
      %p190 = scmp.lt.s32.totalorder %s15, 3
      %p191 = pnand %p189, %p190
      %p192 = pneg %p191
      // Predicated region
      $region37: #{tpu_custom_call.1} parent=5 // pred_check
        _
      $region38: #{tpu_custom_call.1} parent=5 // pred_check_branch
        %194 = sbr.rel (%p191) target = $region40
      $region39: #{tpu_custom_call.1} parent=5 // pred_region
        %s195 = ssub.s32 %s15, 1
        %p196 = pneg %p36
        %p197 = pneg %p33
        %p198 = scmp.lt.s32.totalorder %s20, 1
        %s199 = scalar_select %p198, %s20, 1
        %s200 = smul.addr %s199, 8
        %s201 = scalar_lea.vmem %s1, %s200
        %p202 = pneg %p62
        %p203 = pneg %p59
        %p204 = pneg %p83
        %p205 = pneg %p80
        %p206 = pneg %p104
        %p207 = pneg %p101
        %p208 = pneg %p125
        %p209 = pneg %p122
        %p210 = pneg %p151
        %p211 = pneg %p148
        %s212 = sand.u32 %s138, 1
        %s213 = scalar_lea.sflag [#allocation4], %s212
        %s214 = sand.u32 %s138, 1
        %s215 = smul.addr %s214, 8
        %s216 = scalar_lea.vmem [#allocation3], %s215
        %p217 = scmp.lt.s32.totalorder %s20, 1
        %s218 = scalar_select %p217, %s20, 1
        %s219 = smul.addr %s218, 8
        %s220 = scalar_lea.vmem %s1, %s219
        %s222 = sld [smem:[#allocation2]]
        %v223 = vld [vmem:[%s220] sm:$0xff]
        %s224 = smul.f32 %s222, 0.5
        %v225 = vstv %s224
        %v226 = vmul.f32 %v223, %v225
        %v227 = vand.u32 2147483647, %v226
        %vm228 = vcmp.le.f32.partialorder %v227, 0.7853982
        %vm229 = vcmp.lt.s32.totalorder %v226, 0
        %v230 = vand.u32 %v226, 2139095040
        %v231 = vshrl.u32 %v230, 23
        %v232 = vsub.s32 %v231, 127
        %v233 = vand.u32 2147483647, %v226
        %v234 = vand.u32 %v233, 8388607
        %v235 = vor.u32 %v234, 8388608
        %v236 = vsub.s32 0, %v235
        %v237 = vadd.s32 %v232, 1
        %vm238 = vcmp.gt.s32.totalorder %v237, 0
        %v239 = vsel %vm238, %v237, 0
        %v240 = vshrl.u32 %v239, 5
        %v241 = vand.u32 %v239, 31
        %v242 = vsub.s32 32, %v241
        %v243 = vshrl.u32 683565275, %v242
        %v244 = vshll.u32 683565275, %v241
        %v245 = vshrl.u32 2475754826, %v242
        %v246 = vor.u32 %v244, %v245
        %v247 = vshll.u32 2475754826, %v241
        %v248 = vshrl.u32 2131351028, %v242
        %v249 = vor.u32 %v247, %v248
        %v250 = vshll.u32 2131351028, %v241
        %v251 = vshrl.u32 2102212464, %v242
        %v252 = vor.u32 %v250, %v251
        %v253 = vshll.u32 2102212464, %v241
        %v254 = vshrl.u32 920167782, %v242
        %v255 = vor.u32 %v253, %v254
        %v256 = vshll.u32 920167782, %v241
        %v257 = vshrl.u32 1326507024, %v242
        %v258 = vor.u32 %v256, %v257
        %vm259 = vcmp.lt.s32.totalorder %v240, 1
        %vm260 = vcmp.lt.s32.totalorder %v240, 2
        %vm261 = vcmp.lt.s32.totalorder %v240, 3
        %vm262 = vcmp.lt.s32.totalorder %v240, 4
        %v263 = vsel %vm259, %v243, %v246
        %v264 = vsel %vm262, %v252, 2102212464
        %v265 = vsel %vm261, %v249, %v264
        %v266 = vsel %vm260, %v263, %v265
        %v267 = vsel %vm259, %v246, %v249
        %v268 = vsel %vm262, %v255, 920167782
        %v269 = vsel %vm261, %v252, %v268
        %v270 = vsel %vm260, %v267, %v269
        %v271 = vsel %vm259, %v249, %v252
        %v272 = vsel %vm262, %v258, 1326507024
        %v273 = vsel %vm261, %v255, %v272
        %v274 = vsel %vm260, %v271, %v273
        %v275 = vshll.u32 %v235, 8
        %v276 = vmul.u32.u64.compose %v275, %v274
        %v277 = vextract.low.u32 %v276
        %v278 = vextract.high.u32 %v276
        %v279 = vmul.u32.u64.compose %v275, %v270
        %v280 = vextract.low.u32 %v279
        %v281 = vextract.high.u32 %v279
        %v282 = vmul.u32 %v275, %v266
        %v283 = vadd.s32 %v278, %v280
        %vm284 = vc.u32 %v278, %v280
        %v285 = vadd.s32 %v281, 1
        %v286 = vsel %vm284, %v285, %v281
        %v287 = vadd.s32 %v282, %v286
        %v288 = vadd.s32 %v287, 536870912
        %v289 = vshrl.u32 %v288, 30
        %v290 = vshll.u32 %v289, 30
        %v291 = vsub.s32 %v287, %v290
        %vm292 = vcmp.lt.s32.totalorder %v291, 0
        %v293 = vsub.s32 0, %v291
        %v294 = vsel %vm292, %v293, %v291
        %v295 = vclz %v294
        %v296 = vsub.s32 %v295, 2
        %vm297 = vcmp.gt.s32.totalorder 0, %v296
        %v298 = vsel %vm297, 0, %v296
        %v299 = vsub.s32 32, %v298
        %v300 = vshll.u32 %v291, %v298
        %v301 = vshrl.u32 %v283, %v299
        %v302 = vor.u32 %v300, %v301
        %v303 = vsub.s32 4294967266, %v298
        %v304 = vadd.s32 %v303, 127
        %v305 = vshll.u32 %v304, 23
        %v306 = vor.u32 4788187, %v305
        %v307 = vand.u32 2147483647, %v306
        %v309 = vcvt.s32.f32 %v302
        %v310 = vmul.f32 %v309, %v307
        %v311 = vxor.u32 %v310, 2147483648
        %v312 = vsel %vm229, %v311, %v310
        %v313 = vsub.s32 4, %v289
        %v314 = vsel %vm229, %v313, %v289
        %v315 = vsel %vm228, %v226, %v312
        %v316 = vsel %vm228, 0, %v314
        %v317 = vcosq.f32.pop %v315
        %v318 = vsinq.f32.pop %v315
        %vm319 = vweird.f32 %v226
        %v320 = vand.u32 %v316, 3
        %vm321 = vcmp.lt.s32.totalorder %v320, 2
        %vm322 = vcmp.eq.s32.totalorder %v320, 0
        %v323 = vxor.u32 %v318, 2147483648
        %v324 = vsel %vm322, %v317, %v323
        %vm325 = vcmp.eq.s32.totalorder %v320, 2
        %v326 = vxor.u32 %v317, 2147483648
        %v327 = vsel %vm325, %v326, %v318
        %v328 = vsel %vm321, %v324, %v327
        %v329 = vsel %vm319, nan, %v328
        %v330 = vand.u32 2147483647, %v226
        %vm331 = vcmp.le.f32.partialorder %v330, 0.7853982
        %vm332 = vcmp.lt.s32.totalorder %v226, 0
        %v333 = vand.u32 %v226, 2139095040
        %v334 = vshrl.u32 %v333, 23
        %v335 = vsub.s32 %v334, 127
        %v336 = vand.u32 2147483647, %v226
        %v337 = vand.u32 %v336, 8388607
        %v338 = vor.u32 %v337, 8388608
        %v339 = vsub.s32 0, %v338
        %v340 = vadd.s32 %v335, 1
        %vm341 = vcmp.gt.s32.totalorder %v340, 0
        %v342 = vsel %vm341, %v340, 0
        %v343 = vshrl.u32 %v342, 5
        %v344 = vand.u32 %v342, 31
        %v345 = vsub.s32 32, %v344
        %v346 = vshrl.u32 683565275, %v345
        %v347 = vshll.u32 683565275, %v344
        %v348 = vshrl.u32 2475754826, %v345
        %v349 = vor.u32 %v347, %v348
        %v350 = vshll.u32 2475754826, %v344
        %v351 = vshrl.u32 2131351028, %v345
        %v352 = vor.u32 %v350, %v351
        %v353 = vshll.u32 2131351028, %v344
        %v354 = vshrl.u32 2102212464, %v345
        %v355 = vor.u32 %v353, %v354
        %v356 = vshll.u32 2102212464, %v344
        %v357 = vshrl.u32 920167782, %v345
        %v358 = vor.u32 %v356, %v357
        %v359 = vshll.u32 920167782, %v344
        %v360 = vshrl.u32 1326507024, %v345
        %v361 = vor.u32 %v359, %v360
        %vm362 = vcmp.lt.s32.totalorder %v343, 1
        %vm363 = vcmp.lt.s32.totalorder %v343, 2
        %vm364 = vcmp.lt.s32.totalorder %v343, 3
        %vm365 = vcmp.lt.s32.totalorder %v343, 4
        %v366 = vsel %vm362, %v346, %v349
        %v367 = vsel %vm365, %v355, 2102212464
        %v368 = vsel %vm364, %v352, %v367
        %v369 = vsel %vm363, %v366, %v368
        %v370 = vsel %vm362, %v349, %v352
        %v371 = vsel %vm365, %v358, 920167782
        %v372 = vsel %vm364, %v355, %v371
        %v373 = vsel %vm363, %v370, %v372
        %v374 = vsel %vm362, %v352, %v355
        %v375 = vsel %vm365, %v361, 1326507024
        %v376 = vsel %vm364, %v358, %v375
        %v377 = vsel %vm363, %v374, %v376
        %v378 = vshll.u32 %v338, 8
        %v379 = vmul.u32.u64.compose %v378, %v377
        %v380 = vextract.low.u32 %v379
        %v381 = vextract.high.u32 %v379
        %v382 = vmul.u32.u64.compose %v378, %v373
        %v383 = vextract.low.u32 %v382
        %v384 = vextract.high.u32 %v382
        %v385 = vmul.u32 %v378, %v369
        %v386 = vadd.s32 %v381, %v383
        %vm387 = vc.u32 %v381, %v383
        %v388 = vadd.s32 %v384, 1
        %v389 = vsel %vm387, %v388, %v384
        %v390 = vadd.s32 %v385, %v389
        %v391 = vadd.s32 %v390, 536870912
        %v392 = vshrl.u32 %v391, 30
        %v393 = vshll.u32 %v392, 30
        %v394 = vsub.s32 %v390, %v393
        %vm395 = vcmp.lt.s32.totalorder %v394, 0
        %v396 = vsub.s32 0, %v394
        %v397 = vsel %vm395, %v396, %v394
        %v398 = vclz %v397
        %v399 = vsub.s32 %v398, 2
        %vm400 = vcmp.gt.s32.totalorder 0, %v399
        %v401 = vsel %vm400, 0, %v399
        %v402 = vsub.s32 32, %v401
        %v403 = vshll.u32 %v394, %v401
        %v404 = vshrl.u32 %v386, %v402
        %v405 = vor.u32 %v403, %v404
        %v406 = vsub.s32 4294967266, %v401
        %v407 = vadd.s32 %v406, 127
        %v408 = vshll.u32 %v407, 23
        %v409 = vor.u32 4788187, %v408
        %v410 = vand.u32 2147483647, %v409
        %v412 = vcvt.s32.f32 %v405
        %v413 = vmul.f32 %v412, %v410
        %v414 = vxor.u32 %v413, 2147483648
        %v415 = vsel %vm332, %v414, %v413
        %v416 = vsub.s32 4, %v392
        %v417 = vsel %vm332, %v416, %v392
        %v418 = vsel %vm331, %v226, %v415
        %v419 = vsel %vm331, 0, %v417
        %v420 = vcosq.f32.pop %v418
        %v421 = vsinq.f32.pop %v418
        %vm422 = vweird.f32 %v226
        %v423 = vadd.s32 %v419, 3
        %v424 = vand.u32 %v423, 3
        %vm425 = vcmp.lt.s32.totalorder %v424, 2
        %vm426 = vcmp.eq.s32.totalorder %v424, 0
        %v427 = vxor.u32 %v421, 2147483648
        %v428 = vsel %vm426, %v420, %v427
        %vm429 = vcmp.eq.s32.totalorder %v424, 2
        %v430 = vxor.u32 %v420, 2147483648
        %v431 = vsel %vm429, %v430, %v421
        %v432 = vsel %vm425, %v428, %v431
        %v433 = vsel %vm422, nan, %v432
        %v434 = vld [vmem:[%s2] sm:$0xff]
        %v435 = vld [vmem:[%s2 + $0x8] sm:$0xff]
        %v436 = vld [vmem:[%s2 + $0x10] sm:$0xff]
        %v437 = vld [vmem:[%s2 + $0x18] sm:$0xff]
        %v438 = vld [vmem:[%s2 + $0x20] sm:$0xff]
        %v439 = vld [vmem:[%s2 + $0x28] sm:$0xff]
        %v440 = vld [vmem:[%s2 + $0x30] sm:$0xff]
        %v441 = vld [vmem:[%s2 + $0x38] sm:$0xff]
        %vm442 = vcmp.gt.f32.partialorder %v434, 0.5
        %vm443 = vcmp.gt.f32.partialorder %v435, 0.5
        %vm444 = vcmp.gt.f32.partialorder %v436, 0.5
        %vm445 = vcmp.gt.f32.partialorder %v437, 0.5
        %vm446 = vcmp.gt.f32.partialorder %v438, 0.5
        %vm447 = vcmp.gt.f32.partialorder %v439, 0.5
        %vm448 = vcmp.gt.f32.partialorder %v440, 0.5
        %vm449 = vcmp.gt.f32.partialorder %v441, 0.5
        %v450 = vsel %vm442, 1, 0
        %v451 = vsel %vm443, 1, 0
        %v452 = vsel %vm444, 1, 0
        %v453 = vsel %vm445, 1, 0
        %v454 = vsel %vm446, 1, 0
        %v455 = vsel %vm447, 1, 0
        %v456 = vsel %vm448, 1, 0
        %v457 = vsel %vm449, 1, 0
        %458 = vset.pattern.permute.xlu0 0
        %459 = vperm.xlu0 %458, %v450
        %v460 = vpop.permute.xlu0 %459
        %461 = vset.pattern.permute.xlu0 0
        %462 = vperm.xlu0 %461, %v451
        %v463 = vpop.permute.xlu0 %462
        %464 = vset.pattern.permute.xlu0 0
        %465 = vperm.xlu0 %464, %v452
        %v466 = vpop.permute.xlu0 %465
        %467 = vset.pattern.permute.xlu0 0
        %468 = vperm.xlu0 %467, %v453
        %v469 = vpop.permute.xlu0 %468
        %470 = vset.pattern.permute.xlu0 0
        %471 = vperm.xlu0 %470, %v454
        %v472 = vpop.permute.xlu0 %471
        %473 = vset.pattern.permute.xlu0 0
        %474 = vperm.xlu0 %473, %v455
        %v475 = vpop.permute.xlu0 %474
        %476 = vset.pattern.permute.xlu0 0
        %477 = vperm.xlu0 %476, %v456
        %v478 = vpop.permute.xlu0 %477
        %479 = vset.pattern.permute.xlu0 0
        %480 = vperm.xlu0 %479, %v457
        %v481 = vpop.permute.xlu0 %480
        %vm482 = vcmp.eq.s32.totalorder %v460, 1
        %vm483 = vcmp.eq.s32.totalorder %v463, 1
        %vm484 = vcmp.eq.s32.totalorder %v466, 1
        %vm485 = vcmp.eq.s32.totalorder %v469, 1
        %vm486 = vcmp.eq.s32.totalorder %v472, 1
        %vm487 = vcmp.eq.s32.totalorder %v475, 1
        %vm488 = vcmp.eq.s32.totalorder %v478, 1
        %vm489 = vcmp.eq.s32.totalorder %v481, 1
        %v490 = vlaneseq
        %v491 = vshrl.u32 %v490, 7
        %v492 = vsub.s32 0, %v491
        %v493 = vrot.slane %v433, %v492
        %v494 = vlaneseq
        %v495 = vshrl.u32 %v494, 7
        %v496 = vsub.s32 0, %v495
        %v497 = vrot.slane %v329, %v496
        %v498 = vsel %vm482, %v493, %v497
        %v499 = vsel %vm483, %v493, %v497
        %v500 = vsel %vm484, %v493, %v497
        %v501 = vsel %vm485, %v493, %v497
        %v502 = vsel %vm486, %v493, %v497
        %v503 = vsel %vm487, %v493, %v497
        %v504 = vsel %vm488, %v493, %v497
        %v505 = vsel %vm489, %v493, %v497
        %506 = vset.pattern.permute.xlu0 1
        %507 = vperm.xlu0 %506, %v450
        %v508 = vpop.permute.xlu0 %507
        %509 = vset.pattern.permute.xlu0 1
        %510 = vperm.xlu0 %509, %v451
        %v511 = vpop.permute.xlu0 %510
        %512 = vset.pattern.permute.xlu0 1
        %513 = vperm.xlu0 %512, %v452
        %v514 = vpop.permute.xlu0 %513
        %515 = vset.pattern.permute.xlu0 1
        %516 = vperm.xlu0 %515, %v453
        %v517 = vpop.permute.xlu0 %516
        %518 = vset.pattern.permute.xlu0 1
        %519 = vperm.xlu0 %518, %v454
        %v520 = vpop.permute.xlu0 %519
        %521 = vset.pattern.permute.xlu0 1
        %522 = vperm.xlu0 %521, %v455
        %v523 = vpop.permute.xlu0 %522
        %524 = vset.pattern.permute.xlu0 1
        %525 = vperm.xlu0 %524, %v456
        %v526 = vpop.permute.xlu0 %525
        %527 = vset.pattern.permute.xlu0 1
        %528 = vperm.xlu0 %527, %v457
        %v529 = vpop.permute.xlu0 %528
        %vm530 = vcmp.eq.s32.totalorder %v508, 1
        %vm531 = vcmp.eq.s32.totalorder %v511, 1
        %vm532 = vcmp.eq.s32.totalorder %v514, 1
        %vm533 = vcmp.eq.s32.totalorder %v517, 1
        %vm534 = vcmp.eq.s32.totalorder %v520, 1
        %vm535 = vcmp.eq.s32.totalorder %v523, 1
        %vm536 = vcmp.eq.s32.totalorder %v526, 1
        %vm537 = vcmp.eq.s32.totalorder %v529, 1
        %v538 = vlaneseq
        %v539 = vshrl.u32 %v538, 7
        %v540 = vsub.s32 1, %v539
        %v541 = vrot.slane %v433, %v540
        %v542 = vlaneseq
        %v543 = vshrl.u32 %v542, 7
        %v544 = vsub.s32 1, %v543
        %v545 = vrot.slane %v329, %v544
        %v546 = vsel %vm530, %v541, %v545
        %v547 = vsel %vm531, %v541, %v545
        %v548 = vsel %vm532, %v541, %v545
        %v549 = vsel %vm533, %v541, %v545
        %v550 = vsel %vm534, %v541, %v545
        %v551 = vsel %vm535, %v541, %v545
        %v552 = vsel %vm536, %v541, %v545
        %v553 = vsel %vm537, %v541, %v545
        %v554 = vmul.f32 %v498, %v546
        %v555 = vmul.f32 %v499, %v547
        %v556 = vmul.f32 %v500, %v548
        %v557 = vmul.f32 %v501, %v549
        %v558 = vmul.f32 %v502, %v550
        %v559 = vmul.f32 %v503, %v551
        %v560 = vmul.f32 %v504, %v552
        %v561 = vmul.f32 %v505, %v553
        %562 = vset.pattern.permute.xlu0 2
        %563 = vperm.xlu0 %562, %v450
        %v564 = vpop.permute.xlu0 %563
        %565 = vset.pattern.permute.xlu0 2
        %566 = vperm.xlu0 %565, %v451
        %v567 = vpop.permute.xlu0 %566
        %568 = vset.pattern.permute.xlu0 2
        %569 = vperm.xlu0 %568, %v452
        %v570 = vpop.permute.xlu0 %569
        %571 = vset.pattern.permute.xlu0 2
        %572 = vperm.xlu0 %571, %v453
        %v573 = vpop.permute.xlu0 %572
        %574 = vset.pattern.permute.xlu0 2
        %575 = vperm.xlu0 %574, %v454
        %v576 = vpop.permute.xlu0 %575
        %577 = vset.pattern.permute.xlu0 2
        %578 = vperm.xlu0 %577, %v455
        %v579 = vpop.permute.xlu0 %578
        %580 = vset.pattern.permute.xlu0 2
        %581 = vperm.xlu0 %580, %v456
        %v582 = vpop.permute.xlu0 %581
        %583 = vset.pattern.permute.xlu0 2
        %584 = vperm.xlu0 %583, %v457
        %v585 = vpop.permute.xlu0 %584
        %vm586 = vcmp.eq.s32.totalorder %v564, 1
        %vm587 = vcmp.eq.s32.totalorder %v567, 1
        %vm588 = vcmp.eq.s32.totalorder %v570, 1
        %vm589 = vcmp.eq.s32.totalorder %v573, 1
        %vm590 = vcmp.eq.s32.totalorder %v576, 1
        %vm591 = vcmp.eq.s32.totalorder %v579, 1
        %vm592 = vcmp.eq.s32.totalorder %v582, 1
        %vm593 = vcmp.eq.s32.totalorder %v585, 1
        %v594 = vlaneseq
        %v595 = vshrl.u32 %v594, 7
        %v596 = vsub.s32 2, %v595
        %v597 = vrot.slane %v433, %v596
        %v598 = vlaneseq
        %v599 = vshrl.u32 %v598, 7
        %v600 = vsub.s32 2, %v599
        %v601 = vrot.slane %v329, %v600
        %v602 = vsel %vm586, %v597, %v601
        %v603 = vsel %vm587, %v597, %v601
        %v604 = vsel %vm588, %v597, %v601
        %v605 = vsel %vm589, %v597, %v601
        %v606 = vsel %vm590, %v597, %v601
        %v607 = vsel %vm591, %v597, %v601
        %v608 = vsel %vm592, %v597, %v601
        %v609 = vsel %vm593, %v597, %v601
        %v610 = vmul.f32 %v554, %v602
        %v611 = vmul.f32 %v555, %v603
        %v612 = vmul.f32 %v556, %v604
        %v613 = vmul.f32 %v557, %v605
        %v614 = vmul.f32 %v558, %v606
        %v615 = vmul.f32 %v559, %v607
        %v616 = vmul.f32 %v560, %v608
        %v617 = vmul.f32 %v561, %v609
        %618 = vset.pattern.permute.xlu0 3
        %619 = vperm.xlu0 %618, %v450
        %v620 = vpop.permute.xlu0 %619
        %621 = vset.pattern.permute.xlu0 3
        %622 = vperm.xlu0 %621, %v451
        %v623 = vpop.permute.xlu0 %622
        %624 = vset.pattern.permute.xlu0 3
        %625 = vperm.xlu0 %624, %v452
        %v626 = vpop.permute.xlu0 %625
        %627 = vset.pattern.permute.xlu0 3
        %628 = vperm.xlu0 %627, %v453
        %v629 = vpop.permute.xlu0 %628
        %630 = vset.pattern.permute.xlu0 3
        %631 = vperm.xlu0 %630, %v454
        %v632 = vpop.permute.xlu0 %631
        %633 = vset.pattern.permute.xlu0 3
        %634 = vperm.xlu0 %633, %v455
        %v635 = vpop.permute.xlu0 %634
        %636 = vset.pattern.permute.xlu0 3
        %637 = vperm.xlu0 %636, %v456
        %v638 = vpop.permute.xlu0 %637
        %639 = vset.pattern.permute.xlu0 3
        %640 = vperm.xlu0 %639, %v457
        %v641 = vpop.permute.xlu0 %640
        %vm642 = vcmp.eq.s32.totalorder %v620, 1
        %vm643 = vcmp.eq.s32.totalorder %v623, 1
        %vm644 = vcmp.eq.s32.totalorder %v626, 1
        %vm645 = vcmp.eq.s32.totalorder %v629, 1
        %vm646 = vcmp.eq.s32.totalorder %v632, 1
        %vm647 = vcmp.eq.s32.totalorder %v635, 1
        %vm648 = vcmp.eq.s32.totalorder %v638, 1
        %vm649 = vcmp.eq.s32.totalorder %v641, 1
        %v650 = vlaneseq
        %v651 = vshrl.u32 %v650, 7
        %v652 = vsub.s32 3, %v651
        %v653 = vrot.slane %v433, %v652
        %v654 = vlaneseq
        %v655 = vshrl.u32 %v654, 7
        %v656 = vsub.s32 3, %v655
        %v657 = vrot.slane %v329, %v656
        %v658 = vsel %vm642, %v653, %v657
        %v659 = vsel %vm643, %v653, %v657
        %v660 = vsel %vm644, %v653, %v657
        %v661 = vsel %vm645, %v653, %v657
        %v662 = vsel %vm646, %v653, %v657
        %v663 = vsel %vm647, %v653, %v657
        %v664 = vsel %vm648, %v653, %v657
        %v665 = vsel %vm649, %v653, %v657
        %v666 = vmul.f32 %v610, %v658
        %v667 = vmul.f32 %v611, %v659
        %v668 = vmul.f32 %v612, %v660
        %v669 = vmul.f32 %v613, %v661
        %v670 = vmul.f32 %v614, %v662
        %v671 = vmul.f32 %v615, %v663
        %v672 = vmul.f32 %v616, %v664
        %v673 = vmul.f32 %v617, %v665
        %674 = vset.pattern.permute.xlu0 4
        %675 = vperm.xlu0 %674, %v450
        %v676 = vpop.permute.xlu0 %675
        %677 = vset.pattern.permute.xlu0 4
        %678 = vperm.xlu0 %677, %v451
        %v679 = vpop.permute.xlu0 %678
        %680 = vset.pattern.permute.xlu0 4
        %681 = vperm.xlu0 %680, %v452
        %v682 = vpop.permute.xlu0 %681
        %683 = vset.pattern.permute.xlu0 4
        %684 = vperm.xlu0 %683, %v453
        %v685 = vpop.permute.xlu0 %684
        %686 = vset.pattern.permute.xlu0 4
        %687 = vperm.xlu0 %686, %v454
        %v688 = vpop.permute.xlu0 %687
        %689 = vset.pattern.permute.xlu0 4
        %690 = vperm.xlu0 %689, %v455
        %v691 = vpop.permute.xlu0 %690
        %692 = vset.pattern.permute.xlu0 4
        %693 = vperm.xlu0 %692, %v456
        %v694 = vpop.permute.xlu0 %693
        %695 = vset.pattern.permute.xlu0 4
        %696 = vperm.xlu0 %695, %v457
        %v697 = vpop.permute.xlu0 %696
        %vm698 = vcmp.eq.s32.totalorder %v676, 1
        %vm699 = vcmp.eq.s32.totalorder %v679, 1
        %vm700 = vcmp.eq.s32.totalorder %v682, 1
        %vm701 = vcmp.eq.s32.totalorder %v685, 1
        %vm702 = vcmp.eq.s32.totalorder %v688, 1
        %vm703 = vcmp.eq.s32.totalorder %v691, 1
        %vm704 = vcmp.eq.s32.totalorder %v694, 1
        %vm705 = vcmp.eq.s32.totalorder %v697, 1
        %v706 = vlaneseq
        %v707 = vshrl.u32 %v706, 7
        %v708 = vsub.s32 4, %v707
        %v709 = vrot.slane %v433, %v708
        %v710 = vlaneseq
        %v711 = vshrl.u32 %v710, 7
        %v712 = vsub.s32 4, %v711
        %v713 = vrot.slane %v329, %v712
        %v714 = vsel %vm698, %v709, %v713
        %v715 = vsel %vm699, %v709, %v713
        %v716 = vsel %vm700, %v709, %v713
        %v717 = vsel %vm701, %v709, %v713
        %v718 = vsel %vm702, %v709, %v713
        %v719 = vsel %vm703, %v709, %v713
        %v720 = vsel %vm704, %v709, %v713
        %v721 = vsel %vm705, %v709, %v713
        %v722 = vmul.f32 %v666, %v714
        %v723 = vmul.f32 %v667, %v715
        %v724 = vmul.f32 %v668, %v716
        %v725 = vmul.f32 %v669, %v717
        %v726 = vmul.f32 %v670, %v718
        %v727 = vmul.f32 %v671, %v719
        %v728 = vmul.f32 %v672, %v720
        %v729 = vmul.f32 %v673, %v721
        %730 = vset.pattern.permute.xlu0 5
        %731 = vperm.xlu0 %730, %v450
        %v732 = vpop.permute.xlu0 %731
        %733 = vset.pattern.permute.xlu0 5
        %734 = vperm.xlu0 %733, %v451
        %v735 = vpop.permute.xlu0 %734
        %736 = vset.pattern.permute.xlu0 5
        %737 = vperm.xlu0 %736, %v452
        %v738 = vpop.permute.xlu0 %737
        %739 = vset.pattern.permute.xlu0 5
        %740 = vperm.xlu0 %739, %v453
        %v741 = vpop.permute.xlu0 %740
        %742 = vset.pattern.permute.xlu0 5
        %743 = vperm.xlu0 %742, %v454
        %v744 = vpop.permute.xlu0 %743
        %745 = vset.pattern.permute.xlu0 5
        %746 = vperm.xlu0 %745, %v455
        %v747 = vpop.permute.xlu0 %746
        %748 = vset.pattern.permute.xlu0 5
        %749 = vperm.xlu0 %748, %v456
        %v750 = vpop.permute.xlu0 %749
        %751 = vset.pattern.permute.xlu0 5
        %752 = vperm.xlu0 %751, %v457
        %v753 = vpop.permute.xlu0 %752
        %vm754 = vcmp.eq.s32.totalorder %v732, 1
        %vm755 = vcmp.eq.s32.totalorder %v735, 1
        %vm756 = vcmp.eq.s32.totalorder %v738, 1
        %vm757 = vcmp.eq.s32.totalorder %v741, 1
        %vm758 = vcmp.eq.s32.totalorder %v744, 1
        %vm759 = vcmp.eq.s32.totalorder %v747, 1
        %vm760 = vcmp.eq.s32.totalorder %v750, 1
        %vm761 = vcmp.eq.s32.totalorder %v753, 1
        %v762 = vlaneseq
        %v763 = vshrl.u32 %v762, 7
        %v764 = vsub.s32 5, %v763
        %v765 = vrot.slane %v433, %v764
        %v766 = vlaneseq
        %v767 = vshrl.u32 %v766, 7
        %v768 = vsub.s32 5, %v767
        %v769 = vrot.slane %v329, %v768
        %v770 = vsel %vm754, %v765, %v769
        %v771 = vsel %vm755, %v765, %v769
        %v772 = vsel %vm756, %v765, %v769
        %v773 = vsel %vm757, %v765, %v769
        %v774 = vsel %vm758, %v765, %v769
        %v775 = vsel %vm759, %v765, %v769
        %v776 = vsel %vm760, %v765, %v769
        %v777 = vsel %vm761, %v765, %v769
        %v778 = vmul.f32 %v722, %v770
        %v779 = vmul.f32 %v723, %v771
        %v780 = vmul.f32 %v724, %v772
        %v781 = vmul.f32 %v725, %v773
        %v782 = vmul.f32 %v726, %v774
        %v783 = vmul.f32 %v727, %v775
        %v784 = vmul.f32 %v728, %v776
        %v785 = vmul.f32 %v729, %v777
        %v786 = vld [vmem:[%s3] sm:$0xff]
        %v787 = vld [vmem:[%s3 + $0x8] sm:$0xff]
        %v788 = vld [vmem:[%s3 + $0x10] sm:$0xff]
        %v789 = vld [vmem:[%s3 + $0x18] sm:$0xff]
        %v790 = vld [vmem:[%s3 + $0x20] sm:$0xff]
        %v791 = vld [vmem:[%s3 + $0x28] sm:$0xff]
        %v792 = vld [vmem:[%s3 + $0x30] sm:$0xff]
        %v793 = vld [vmem:[%s3 + $0x38] sm:$0xff]
        %v794 = vld [vmem:[%s3 + $0x40] sm:$0xff]
        %v795 = vld [vmem:[%s3 + $0x48] sm:$0xff]
        %v796 = vld [vmem:[%s3 + $0x50] sm:$0xff]
        %v797 = vld [vmem:[%s3 + $0x58] sm:$0xff]
        %v798 = vld [vmem:[%s3 + $0x60] sm:$0xff]
        %v799 = vld [vmem:[%s3 + $0x68] sm:$0xff]
        %v800 = vld [vmem:[%s3 + $0x70] sm:$0xff]
        %v801 = vld [vmem:[%s3 + $0x78] sm:$0xff]
        %vm802 = vcmask 523264
        %v804 = vsel %vm802, %v786, 0
        %v807 = vsel %vm802, %v787, 0
        %v810 = vsel %vm802, %v788, 0
        %v813 = vsel %vm802, %v789, 0
        %v816 = vsel %vm802, %v790, 0
        %v819 = vsel %vm802, %v791, 0
        %v822 = vsel %vm802, %v792, 0
        %v825 = vsel %vm802, %v793, 0
        %v828 = vsel %vm802, %v794, 0
        %v831 = vsel %vm802, %v795, 0
        %v834 = vsel %vm802, %v796, 0
        %v837 = vsel %vm802, %v797, 0
        %v840 = vsel %vm802, %v798, 0
        %v843 = vsel %vm802, %v799, 0
        %v846 = vsel %vm802, %v800, 0
        %v849 = vsel %vm802, %v801, 0
        %851 = vmatprep.subr.mxu0 0.0
        %852 = vmatpush1.msra.mxu0 0.0
        %853 = vmatprep.subr.mxu0 0.0
        %854 = vmatpush1.msra.mxu0 0.0
        %855 = vmatprep.subr.mxu0 0.0
        %856 = vmatpush1.msra.mxu0 0.0
        %857 = vmatprep.subr.mxu0 0.0
        %858 = vmatpush1.msra.mxu0 0.0
        %859 = vmatprep.subr.mxu0 0.0
        %860 = vmatpush1.msra.mxu0 0.0
        %861 = vmatprep.subr.mxu0 0.0
        %862 = vmatpush1.msra.mxu0 0.0
        %863 = vmatprep.subr.mxu0 0.0
        %864 = vmatpush1.msra.mxu0 0.0
        %865 = vmatprep.subr.mxu0 0.0
        %866 = vmatpush1.msra.mxu0 0.0
        %867 = vmatprep.subr.mxu0 0.0
        %868 = vmatpush1.msra.mxu0 %v785
        %869 = vmatprep.subr.mxu0 0.0
        %870 = vmatpush1.msra.mxu0 %v784
        %871 = vmatprep.subr.mxu0 0.0
        %872 = vmatpush1.msra.mxu0 %v783
        %873 = vmatprep.subr.mxu0 0.0
        %874 = vmatpush1.msra.mxu0 %v782
        %875 = vmatprep.subr.mxu0 0.0
        %876 = vmatpush1.msra.mxu0 %v781
        %877 = vmatprep.subr.mxu0 0.0
        %878 = vmatpush1.msra.mxu0 %v780
        %879 = vmatprep.subr.mxu0 0.0
        %880 = vmatpush1.msra.mxu0 %v779
        %881 = vmatprep.subr.mxu0 0.0
        %882 = vmatpush1.msra.mxu0 %v778
        %883 = vmatprep.subr.mxu0 0.0
        %884 = vmatpush2.msra.mxu0 0.0
        %885 = vmatprep.subr.mxu0 0.0
        %886 = vmatpush2.msra.mxu0 0.0
        %887 = vmatprep.subr.mxu0 0.0
        %888 = vmatpush2.msra.mxu0 0.0
        %889 = vmatprep.subr.mxu0 0.0
        %890 = vmatpush2.msra.mxu0 0.0
        %891 = vmatprep.subr.mxu0 0.0
        %892 = vmatpush2.msra.mxu0 0.0
        %893 = vmatprep.subr.mxu0 0.0
        %894 = vmatpush2.msra.mxu0 0.0
        %895 = vmatprep.subr.mxu0 0.0
        %896 = vmatpush2.msra.mxu0 0.0
        %897 = vmatprep.subr.mxu0 0.0
        %898 = vmatpush2.msra.mxu0 0.0
        %899 = vmatprep.subr.mxu0 0.0
        %900 = vmatpush2.msra.mxu0 0.0
        %901 = vmatprep.subr.mxu0 0.0
        %902 = vmatpush2.msra.mxu0 0.0
        %903 = vmatprep.subr.mxu0 0.0
        %904 = vmatpush2.msra.mxu0 0.0
        %905 = vmatprep.subr.mxu0 0.0
        %906 = vmatpush2.msra.mxu0 0.0
        %907 = vmatprep.subr.mxu0 0.0
        %908 = vmatpush2.msra.mxu0 0.0
        %909 = vmatprep.subr.mxu0 0.0
        %910 = vmatpush2.msra.mxu0 0.0
        %911 = vmatprep.subr.mxu0 0.0
        %912 = vmatpush2.msra.mxu0 0.0
        %913 = vmatprep.subr.mxu0 0.0
        %914 = vmatpush2.msra.mxu0 0.0
        %915 = vmatprep.mubr.f32.mxu0 0.0
        %916 = vmatmul.mubr.f32.gmra.mxu0 %v804
        %v917 = vpop.f32.mrf.mxu0
        %v918 = vadd.f32 0.0, %v917
        %v919 = vpop.f32.mrf.mxu0
        %920 = vmatprep.mubr.f32.mxu0 0.0
        %921 = vmatmul.mubr.f32.gmra.mxu0 %v807
        %v922 = vpop.f32.mrf.mxu0
        %v923 = vadd.f32 0.0, %v922
        %v924 = vpop.f32.mrf.mxu0
        %925 = vmatprep.mubr.f32.mxu0 0.0
        %926 = vmatmul.mubr.f32.gmra.mxu0 %v810
        %v927 = vpop.f32.mrf.mxu0
        %v928 = vadd.f32 0.0, %v927
        %v929 = vpop.f32.mrf.mxu0
        %930 = vmatprep.mubr.f32.mxu0 0.0
        %931 = vmatmul.mubr.f32.gmra.mxu0 %v813
        %v932 = vpop.f32.mrf.mxu0
        %v933 = vadd.f32 0.0, %v932
        %v934 = vpop.f32.mrf.mxu0
        %935 = vmatprep.mubr.f32.mxu0 0.0
        %936 = vmatmul.mubr.f32.gmra.mxu0 %v816
        %v937 = vpop.f32.mrf.mxu0
        %v938 = vadd.f32 0.0, %v937
        %v939 = vpop.f32.mrf.mxu0
        %940 = vmatprep.mubr.f32.mxu0 0.0
        %941 = vmatmul.mubr.f32.gmra.mxu0 %v819
        %v942 = vpop.f32.mrf.mxu0
        %v943 = vadd.f32 0.0, %v942
        %v944 = vpop.f32.mrf.mxu0
        %945 = vmatprep.mubr.f32.mxu0 0.0
        %946 = vmatmul.mubr.f32.gmra.mxu0 %v822
        %v947 = vpop.f32.mrf.mxu0
        %v948 = vadd.f32 0.0, %v947
        %v949 = vpop.f32.mrf.mxu0
        %950 = vmatprep.mubr.f32.mxu0 0.0
        %951 = vmatmul.mubr.f32.gmra.mxu0 %v825
        %v952 = vpop.f32.mrf.mxu0
        %v953 = vadd.f32 0.0, %v952
        %v954 = vpop.f32.mrf.mxu0
        %955 = vmatprep.mubr.f32.mxu0 0.0
        %956 = vmatmul.mubr.f32.gmra.mxu0 %v828
        %v957 = vpop.f32.mrf.mxu0
        %v958 = vadd.f32 0.0, %v957
        %v959 = vpop.f32.mrf.mxu0
        %960 = vmatprep.mubr.f32.mxu0 0.0
        %961 = vmatmul.mubr.f32.gmra.mxu0 %v831
        %v962 = vpop.f32.mrf.mxu0
        %v963 = vadd.f32 0.0, %v962
        %v964 = vpop.f32.mrf.mxu0
        %965 = vmatprep.mubr.f32.mxu0 0.0
        %966 = vmatmul.mubr.f32.gmra.mxu0 %v834
        %v967 = vpop.f32.mrf.mxu0
        %v968 = vadd.f32 0.0, %v967
        %v969 = vpop.f32.mrf.mxu0
        %970 = vmatprep.mubr.f32.mxu0 0.0
        %971 = vmatmul.mubr.f32.gmra.mxu0 %v837
        %v972 = vpop.f32.mrf.mxu0
        %v973 = vadd.f32 0.0, %v972
        %v974 = vpop.f32.mrf.mxu0
        %975 = vmatprep.mubr.f32.mxu0 0.0
        %976 = vmatmul.mubr.f32.gmra.mxu0 %v840
        %v977 = vpop.f32.mrf.mxu0
        %v978 = vadd.f32 0.0, %v977
        %v979 = vpop.f32.mrf.mxu0
        %980 = vmatprep.mubr.f32.mxu0 0.0
        %981 = vmatmul.mubr.f32.gmra.mxu0 %v843
        %v982 = vpop.f32.mrf.mxu0
        %v983 = vadd.f32 0.0, %v982
        %v984 = vpop.f32.mrf.mxu0
        %985 = vmatprep.mubr.f32.mxu0 0.0
        %986 = vmatmul.mubr.f32.gmra.mxu0 %v846
        %v987 = vpop.f32.mrf.mxu0
        %v988 = vadd.f32 0.0, %v987
        %v989 = vpop.f32.mrf.mxu0
        %990 = vmatprep.mubr.f32.mxu0 0.0
        %991 = vmatmul.mubr.f32.gmra.mxu0 %v849
        %v992 = vpop.f32.mrf.mxu0
        %v993 = vadd.f32 0.0, %v992
        %v994 = vpop.f32.mrf.mxu0
        %995 = vdwg.mxu0
        %v996 = vmul.f32 %v918, %v918
        %v997 = vmul.f32 %v923, %v923
        %v998 = vmul.f32 %v928, %v928
        %v999 = vmul.f32 %v933, %v933
        %v1000 = vmul.f32 %v938, %v938
        %v1001 = vmul.f32 %v943, %v943
        %v1002 = vmul.f32 %v948, %v948
        %v1003 = vmul.f32 %v953, %v953
        %v1004 = vmul.f32 %v958, %v958
        %v1005 = vmul.f32 %v963, %v963
        %v1006 = vmul.f32 %v968, %v968
        %v1007 = vmul.f32 %v973, %v973
        %v1008 = vmul.f32 %v978, %v978
        %v1009 = vmul.f32 %v983, %v983
        %v1010 = vmul.f32 %v988, %v988
        %v1011 = vmul.f32 %v993, %v993
        %v1012 = vld [vmem:[%s4] sm:$0xf]
        %v1013 = vpack.c.bf16 %v997, %v996
        %v1014 = vpack.c.bf16 %v999, %v998
        %v1015 = vpack.c.bf16 %v1001, %v1000
        %v1016 = vpack.c.bf16 %v1003, %v1002
        %v1017 = vpack.c.bf16 %v1005, %v1004
        %v1018 = vpack.c.bf16 %v1007, %v1006
        %v1019 = vpack.c.bf16 %v1009, %v1008
        %v1020 = vpack.c.bf16 %v1011, %v1010
        %1021 = vmatprep.subr.bf16.mxu0 0
        %1022 = vmatpush1.bf16.msra.mxu0 %v1020
        %1023 = vmatprep.subr.bf16.mxu0 0
        %1024 = vmatpush1.bf16.msra.mxu0 %v1019
        %1025 = vmatprep.subr.bf16.mxu0 0
        %1026 = vmatpush1.bf16.msra.mxu0 %v1018
        %1027 = vmatprep.subr.bf16.mxu0 0
        %1028 = vmatpush1.bf16.msra.mxu0 %v1017
        %1029 = vmatprep.subr.bf16.mxu0 0
        %1030 = vmatpush1.bf16.msra.mxu0 %v1016
        %1031 = vmatprep.subr.bf16.mxu0 0
        %1032 = vmatpush1.bf16.msra.mxu0 %v1015
        %1033 = vmatprep.subr.bf16.mxu0 0
        %1034 = vmatpush1.bf16.msra.mxu0 %v1014
        %1035 = vmatprep.subr.bf16.mxu0 0
        %1036 = vmatpush1.bf16.msra.mxu0 %v1013
        %1037 = vmatprep.subr.bf16.mxu0 0
        %1038 = vmatpush2.bf16.msra.mxu0 0
        %1039 = vmatprep.subr.bf16.mxu0 0
        %1040 = vmatpush2.bf16.msra.mxu0 0
        %1041 = vmatprep.subr.bf16.mxu0 0
        %1042 = vmatpush2.bf16.msra.mxu0 0
        %1043 = vmatprep.subr.bf16.mxu0 0
        %1044 = vmatpush2.bf16.msra.mxu0 0
        %1045 = vmatprep.subr.bf16.mxu0 0
        %1046 = vmatpush2.bf16.msra.mxu0 0
        %1047 = vmatprep.subr.bf16.mxu0 0
        %1048 = vmatpush2.bf16.msra.mxu0 0
        %1049 = vmatprep.subr.bf16.mxu0 0
        %1050 = vmatpush2.bf16.msra.mxu0 0
        %1051 = vmatprep.subr.bf16.mxu0 0
        %1052 = vmatpush2.bf16.msra.mxu0 0
        %1053 = vmatprep.mubr.bf16.mxu0 0
        %1054 = vmatmul.mubr.bf16.gmra.mxu0 %v1012
        %v1055 = vpop.f32.mrf.mxu0
        %v1056 = vadd.f32 0.0, %v1055
        %v1057 = vpop.f32.mrf.mxu0
        %v1058 = vpop.f32.mrf.mxu0
        %v1059 = vpop.f32.mrf.mxu0
        %1060 = vdwg.mxu0
        %1061 = vst [vmem:[%s216] sm:$0xff] %v1056
        %s1062 = sand.u32 %s138, 1
        %s1063 = scalar_lea.sflag [#allocation4], %s1062
        %s1064 = sand.u32 %s138, 1
        %s1065 = smul.addr %s1064, 8
        %s1066 = scalar_lea.vmem [#allocation3], %s1065
        // Predicated region
        $region41: #{tpu_custom_call.1} parent=39 // pred_check
          %p1067 = pneg %p148
        $region42: #{tpu_custom_call.1} parent=39 // pred_check_branch
          %1069 = sbr.rel (%p1067) target = $region44
        $region43: #{tpu_custom_call.1} parent=39 // pred_region
          %s1071 = ssub.s32 128, 128
          %1072 = vsyncadd %s1063, %s1071
          %s1073 = smul.addr %s20, 128
          %s1074 = scalar_lea.hbm %s5, %s1073
          %s1076 = sshll.u32 %s1066, 4
          %s1077 = int_to_ptr.vmem [resolvable:$true] %s1076
          %1079 = dma.vmem_to_hbm [thread:$0]  %s1077, 128, %s1074, %s1063
        $region44: #{tpu_custom_call.1} parent=39 // pred_fallthru
          _
      $region40: #{tpu_custom_call.1} parent=5 // pred_fallthru
        _
      %p1080 = scmp.le.s32.totalorder 2, %s15
      // Predicated region
      $region45: #{tpu_custom_call.1} parent=5 // pred_check
        %p1081 = pneg %p1080
      $region46: #{tpu_custom_call.1} parent=5 // pred_check_branch
        %1083 = sbr.rel (%p1081) target = $region48
      $region47: #{tpu_custom_call.1} parent=5 // pred_region
        %s1084 = ssub.s32 %s15, 2
        // Predicated region
        $region49: #{tpu_custom_call.1} parent=47 // pred_check
          %p1085 = pneg %p154
        $region50: #{tpu_custom_call.1} parent=47 // pred_check_branch
          %1087 = sbr.rel (%p1085) target = $region52
        $region51: #{tpu_custom_call.1} parent=47 // pred_region
          %s1088 = sand.u32 %s139, 1
          %s1089 = scalar_lea.sflag [#allocation4], %s1088
          %s1090 = sand.u32 %s139, 1
          %s1091 = smul.addr %s1090, 8
          %s1092 = scalar_lea.vmem [#allocation3], %s1091
          %1093 = dma.done %s1089, 128
        $region52: #{tpu_custom_call.1} parent=47 // pred_fallthru
          _
      $region48: #{tpu_custom_call.1} parent=5 // pred_fallthru
        _
    $region6: #{tpu_custom_call.1} parent=1 // loop_footer
      %s19 = sadd.s32 1, %s15
    $region7: #{tpu_custom_call.1} parent=1 // loop_footer_branch
      %14 = sbr.rel target = $region3
    $region8: #{tpu_custom_call.1} parent=1 // loop_exit
      _
    %1094 = vsyncpa [#allocation4], 1
    %s1095 = scalar_lea.sflag [#allocation4], 1
    %1096 = vsyncpa %s1095, 1

</llo_original>
